<compile_context>
chip_gen: v7x
topology: tpu7x:2x2x1
jax: 0.10.0
libtpu: 0.0.40
codegen_flags: <defaults>
</compile_context>

<pallas_src>
import functools

import jax
import jax.numpy as jnp
from jax import lax
from jax.experimental import pallas as pl
from jax.experimental.pallas import tpu as pltpu

IGNORE_INDEX = 255
SMOOTH = 1.0
DEFAULT_TILE_HW = 8192  # lanes per HW tile; fits comfortably in 32 MiB scoped
                        # VMEM (v6e/v7x defaults) for typical C, sweepable.


def _round_up(x, m):
    return ((x + m - 1) // m) * m


def _combined_loss_kernel(hw_total, tile_hw,
                          logits_ref, tgt_ref,          # inputs
                          cls_ref, ce_ref,              # outputs
                          acc_inter, acc_psum, acc_osum, acc_ce, acc_cnt):
    # logits_ref: (1, C, T) input dtype ; tgt_ref: (1, 1, T) i32
    hw_idx = pl.program_id(1)
    n_hw = pl.num_programs(1)

    @pl.when(hw_idx == 0)
    def _():
        acc_inter[...] = jnp.zeros_like(acc_inter)
        acc_psum[...] = jnp.zeros_like(acc_psum)
        acc_osum[...] = jnp.zeros_like(acc_osum)
        acc_ce[...] = jnp.zeros_like(acc_ce)
        acc_cnt[...] = jnp.zeros_like(acc_cnt)

    logits = logits_ref[0].astype(jnp.float32)          # (C, T) f32 (in-kernel upcast)
    tgt = tgt_ref[0]                                    # (1, T) i32
    C, T = logits.shape

    valid_b = tgt != IGNORE_INDEX                       # (1, T) bool
    if hw_total % tile_hw != 0:
        # Mask the ragged tail of the last tile so padded lanes contribute 0
        # and cannot introduce inf/nan through the softmax.
        col = lax.broadcasted_iota(jnp.int32, (1, T), 1) + hw_idx * tile_hw
        in_bounds = col < hw_total                      # (1, T) bool
        valid_b = valid_b & in_bounds
        logits = jnp.where(in_bounds, logits, 0.0)      # (C, T)
    valid = valid_b.astype(jnp.float32)                 # (1, T)

    tgt_c = jnp.clip(tgt, 0, C - 1)                     # (1, T)

    # softmax over the class (sublane) axis
    m = jnp.max(logits, axis=0, keepdims=True)          # (1, T)
    ex = jnp.exp(logits - m)                            # (C, T)
    sumexp = jnp.sum(ex, axis=0, keepdims=True)         # (1, T)
    inv = pl.reciprocal(sumexp)                         # (1, T)  EUP, once per pixel
    probs = ex * inv                                    # (C, T)
    lse = m + jnp.log(sumexp)                           # (1, T)

    # masked one-hot of the (clamped) targets along the class axis
    class_ids = lax.broadcasted_iota(jnp.int32, (C, T), 0)
    onehot_m = jnp.where(class_ids == tgt_c, valid, 0.0)   # (C, T), already * valid

    # ---- cross entropy partial sums ----
    logit_t = jnp.sum(logits * onehot_m, axis=0, keepdims=True)   # (1, T)
    ce_pix = (lse - logit_t) * valid                              # (1, T)
    acc_ce[...] += jnp.sum(ce_pix, axis=1, keepdims=True)         # (1, 1)
    acc_cnt[...] += jnp.sum(valid, axis=1, keepdims=True)         # (1, 1)

    # ---- dice partial sums (per-class spatial sums) ----
    acc_inter[...] += jnp.sum(probs * onehot_m, axis=1, keepdims=True)  # (C, 1)
    acc_psum[...] += jnp.sum(probs * valid, axis=1, keepdims=True)      # (C, 1)
    acc_osum[...] += jnp.sum(onehot_m, axis=1, keepdims=True)           # (C, 1)

    @pl.when(hw_idx == n_hw - 1)
    def _():
        cls_ref[...] = jnp.concatenate(
            [acc_inter[...], acc_psum[...], acc_osum[...]], axis=1
        ).reshape(1, C, 3)
        ce_ref[...] = jnp.concatenate(
            [acc_ce[...], acc_cnt[...]], axis=1
        ).reshape(1, 1, 2)


def combined_loss(logits_nchw, targets_nhw, ce_weight=1.0, dice_weight=1.0,
                  tile_hw=DEFAULT_TILE_HW):
    """CombinedLoss.forward. logits_nchw: (N,C,H,W) float, targets_nhw: (N,H,W) int."""
    N, C, H, W = logits_nchw.shape
    HW = H * W

    # reshape only (no dtype copy of the big tensor); upcast happens in-kernel
    logits = logits_nchw.reshape(N, C, HW)
    tgt = targets_nhw.reshape(N, 1, HW).astype(jnp.int32)

    tile = min(_round_up(tile_hw, 128), _round_up(HW, 128))
    n_hw = pl.cdiv(HW, tile)

    kernel = functools.partial(_combined_loss_kernel, HW, tile)

    cls_stats, ce_stats = pl.pallas_call(
        kernel,
        out_shape=(
            jax.ShapeDtypeStruct((N, C, 3), jnp.float32),   # [inter, psum, osum]
            jax.ShapeDtypeStruct((N, 1, 2), jnp.float32),   # [ce_sum, valid_count]
        ),
        grid=(N, n_hw),
        in_specs=[
            pl.BlockSpec((1, C, tile), lambda n, h: (n, 0, h)),
            pl.BlockSpec((1, 1, tile), lambda n, h: (n, 0, h)),
        ],
        out_specs=(
            pl.BlockSpec((1, C, 3), lambda n, h: (n, 0, 0)),
            pl.BlockSpec((1, 1, 2), lambda n, h: (n, 0, 0)),
        ),
        scratch_shapes=[
            pltpu.VMEM((C, 1), jnp.float32),   # intersection
            pltpu.VMEM((C, 1), jnp.float32),   # probs sum
            pltpu.VMEM((C, 1), jnp.float32),   # one-hot sum
            pltpu.VMEM((1, 1), jnp.float32),   # ce sum
            pltpu.VMEM((1, 1), jnp.float32),   # valid count
        ],
        compiler_params=pltpu.CompilerParams(
            dimension_semantics=("parallel", "arbitrary")),
    )(logits, tgt)

    # CE: mean over all valid pixels across the whole batch (PyTorch semantics).
    ce = jnp.sum(ce_stats[:, 0, 0]) / jnp.sum(ce_stats[:, 0, 1])

    # Dice (no class_weights branch: (I + s) / (U + s), NOT 2*I).
    inter = cls_stats[:, :, 0]
    union = cls_stats[:, :, 1] + cls_stats[:, :, 2]
    dice = (inter + SMOOTH) / (union + SMOOTH)
    dice_loss = 1.0 - jnp.mean(dice)

    return ce_weight * ce + dice_weight * dice_loss


def _reference_combined_loss(logits, targets, ce_weight=1.0, dice_weight=1.0):
    """Pure-JAX reference (mirrors the PyTorch forward)."""
    N, C, H, W = logits.shape
    valid = (targets != IGNORE_INDEX)
    tc = jnp.clip(targets, 0, C - 1)
    lse = jax.scipy.special.logsumexp(logits, axis=1)                      # (N,H,W)
    logit_t = jnp.take_along_axis(logits, tc[:, None], axis=1)[:, 0]       # (N,H,W)
    ce = jnp.sum((lse - logit_t) * valid) / jnp.sum(valid)
    vm = valid[:, None].astype(jnp.float32)
    probs = jax.nn.softmax(logits, axis=1) * vm
    onehot = jnp.moveaxis(jax.nn.one_hot(tc, C), -1, 1) * vm
    inter = jnp.sum(probs * onehot, axis=(2, 3))
    union = jnp.sum(probs, axis=(2, 3)) + jnp.sum(onehot, axis=(2, 3))
    dice = (inter + SMOOTH) / (union + SMOOTH)
    return ce_weight * ce + dice_weight * (1.0 - jnp.mean(dice))


if __name__ == "__main__":
    key = jax.random.PRNGKey(0)
    k1, k2, k3 = jax.random.split(key, 3)

    N, C, H, W = 2, 4, 16, 16
    logits = jax.random.normal(k1, (N, C, H, W), dtype=jnp.float32)
    targets = jax.random.randint(k2, (N, H, W), 0, C, dtype=jnp.int32)
    ignore_mask = jax.random.bernoulli(k3, 0.1, (N, H, W))
    targets = jnp.where(ignore_mask, IGNORE_INDEX, targets)

    ref = _reference_combined_loss(logits, targets)

    # 1) single-tile path (HW = 256 -> one 256-lane tile)
    out = jax.block_until_ready(combined_loss(logits, targets))
    assert jnp.allclose(out, ref, rtol=1e-5, atol=1e-5), (out, ref)

    # 2) multi-tile path (force 128-lane tiles -> 2 HW tiles per image)
    out_tiled = jax.block_until_ready(combined_loss(logits, targets, tile_hw=128))
    assert jnp.allclose(out_tiled, ref, rtol=1e-5, atol=1e-5), (out_tiled, ref)

    # 3) ragged-tail path (HW = 18*18 = 324 -> 2 full tiles + masked tail), bf16 logits
    k4, k5, k6 = jax.random.split(jax.random.PRNGKey(1), 3)
    H2 = W2 = 18
    logits2 = jax.random.normal(k4, (N, C, H2, W2), dtype=jnp.float32).astype(jnp.bfloat16)
    targets2 = jax.random.randint(k5, (N, H2, W2), 0, C, dtype=jnp.int32)
    targets2 = jnp.where(jax.random.bernoulli(k6, 0.1, (N, H2, W2)),
                         IGNORE_INDEX, targets2)
    out2 = jax.block_until_ready(combined_loss(logits2, targets2, tile_hw=128))
    ref2 = _reference_combined_loss(logits2.astype(jnp.float32), targets2)
    assert jnp.allclose(out2, ref2, rtol=1e-4, atol=1e-4), (out2, ref2)

    print("KERNEL_OK")
</pallas_src>

<mosaic_0001>
module attributes {stable_mosaic.version = 11 : i64} {
  func.func @_combined_loss_kernel(%arg0: i32, %arg1: i32, %arg2: memref<1x4x256xf32, #tpu.memory_space<vmem>>, %arg3: memref<1x1x256xi32, #tpu.memory_space<vmem>>, %arg4: memref<1x4x3xf32, #tpu.memory_space<vmem>>, %arg5: memref<1x1x2xf32, #tpu.memory_space<vmem>>, %arg6: memref<4x1xf32, #tpu.memory_space<vmem>>, %arg7: memref<4x1xf32, #tpu.memory_space<vmem>>, %arg8: memref<4x1xf32, #tpu.memory_space<vmem>>, %arg9: memref<1x1xf32, #tpu.memory_space<vmem>>, %arg10: memref<1x1xf32, #tpu.memory_space<vmem>>) attributes {dimension_semantics = [#tpu.dimension_semantics<parallel>, #tpu.dimension_semantics<arbitrary>], iteration_bounds = array<i64: 2, 1>, scalar_prefetch = 0 : i64, scratch_operands = 5 : i64, tpu.core_type = #tpu.core_type<tc>, window_params = [{transform_indices = @transform_0, window_bounds = array<i64: 1, 4, 256>}, {transform_indices = @transform_1, window_bounds = array<i64: 1, 1, 256>}, {transform_indices = @transform_2, window_bounds = array<i64: 1, 4, 3>}, {transform_indices = @transform_3, window_bounds = array<i64: 1, 1, 2>}]} {
    %c0_i32 = arith.constant 0 : i32
    %0 = arith.cmpi eq, %arg1, %c0_i32 : i32
    %1 = arith.extui %0 : i1 to i32
    %c0_i32_0 = arith.constant 0 : i32
    %2 = arith.cmpi ne, %1, %c0_i32_0 : i32
    scf.if %2 {
      %cst_37 = arith.constant 0.000000e+00 : f32
      %70 = vector.broadcast %cst_37 : f32 to vector<4x1xf32>
      %c0_38 = arith.constant 0 : index
      %c0_39 = arith.constant 0 : index
      %71 = vector.load %arg6[%c0_38, %c0_39] : memref<4x1xf32, #tpu.memory_space<vmem>>, vector<4x1xf32>
      tpu.vector_store %arg6[%c0_38, %c0_39], %70 {strides = array<i32>} : memref<4x1xf32, #tpu.memory_space<vmem>>, vector<4x1xf32>,
      %cst_40 = arith.constant 0.000000e+00 : f32
      %72 = vector.broadcast %cst_40 : f32 to vector<4x1xf32>
      %c0_41 = arith.constant 0 : index
      %c0_42 = arith.constant 0 : index
      %73 = vector.load %arg7[%c0_41, %c0_42] : memref<4x1xf32, #tpu.memory_space<vmem>>, vector<4x1xf32>
      tpu.vector_store %arg7[%c0_41, %c0_42], %72 {strides = array<i32>} : memref<4x1xf32, #tpu.memory_space<vmem>>, vector<4x1xf32>,
      %cst_43 = arith.constant 0.000000e+00 : f32
      %74 = vector.broadcast %cst_43 : f32 to vector<4x1xf32>
      %c0_44 = arith.constant 0 : index
      %c0_45 = arith.constant 0 : index
      %75 = vector.load %arg8[%c0_44, %c0_45] : memref<4x1xf32, #tpu.memory_space<vmem>>, vector<4x1xf32>
      tpu.vector_store %arg8[%c0_44, %c0_45], %74 {strides = array<i32>} : memref<4x1xf32, #tpu.memory_space<vmem>>, vector<4x1xf32>,
      %cst_46 = arith.constant 0.000000e+00 : f32
      %76 = vector.broadcast %cst_46 : f32 to vector<1x1xf32>
      %c0_47 = arith.constant 0 : index
      %c0_48 = arith.constant 0 : index
      %77 = vector.load %arg9[%c0_47, %c0_48] : memref<1x1xf32, #tpu.memory_space<vmem>>, vector<1x1xf32>
      tpu.vector_store %arg9[%c0_47, %c0_48], %76 {strides = array<i32>} : memref<1x1xf32, #tpu.memory_space<vmem>>, vector<1x1xf32>,
      %cst_49 = arith.constant 0.000000e+00 : f32
      %78 = vector.broadcast %cst_49 : f32 to vector<1x1xf32>
      %c0_50 = arith.constant 0 : index
      %c0_51 = arith.constant 0 : index
      %79 = vector.load %arg10[%c0_50, %c0_51] : memref<1x1xf32, #tpu.memory_space<vmem>>, vector<1x1xf32>
      tpu.vector_store %arg10[%c0_50, %c0_51], %78 {strides = array<i32>} : memref<1x1xf32, #tpu.memory_space<vmem>>, vector<1x1xf32>,
    } else {
    }
    %c0 = arith.constant 0 : index
    %c0_1 = arith.constant 0 : index
    %c0_2 = arith.constant 0 : index
    %3 = vector.load %arg2[%c0, %c0_1, %c0_2] : memref<1x4x256xf32, #tpu.memory_space<vmem>>, vector<1x4x256xf32>
    %4 = vector.shape_cast %3 : vector<1x4x256xf32> to vector<4x256xf32>
    %c0_3 = arith.constant 0 : index
    %c0_4 = arith.constant 0 : index
    %c0_5 = arith.constant 0 : index
    %5 = vector.load %arg3[%c0_3, %c0_4, %c0_5] : memref<1x1x256xi32, #tpu.memory_space<vmem>>, vector<1x1x256xi32>
    %6 = vector.shape_cast %5 : vector<1x1x256xi32> to vector<1x256xi32>
    %c255_i32 = arith.constant 255 : i32
    %7 = vector.broadcast %c255_i32 : i32 to vector<1x256xi32>
    %8 = arith.cmpi ne, %6, %7 : vector<1x256xi32>
    %9 = arith.extui %8 : vector<1x256xi1> to vector<1x256xi32>
    %10 = arith.sitofp %9 : vector<1x256xi32> to vector<1x256xf32>
    %c0_i32_6 = arith.constant 0 : i32
    %c3_i32 = arith.constant 3 : i32
    %11 = vector.broadcast %c0_i32_6 : i32 to vector<1x256xi32>
    %12 = arith.maxsi %11, %6 : vector<1x256xi32>
    %13 = vector.broadcast %c3_i32 : i32 to vector<1x256xi32>
    %14 = arith.minsi %13, %12 : vector<1x256xi32>
    %cst = arith.constant dense<0xFF800000> : vector<256xf32>
    %15 = vector.multi_reduction <maximumf>, %4, %cst [0] : vector<4x256xf32> to vector<256xf32>
    %16 = vector.shape_cast %15 : vector<256xf32> to vector<1x256xf32>
    %17 = vector.broadcast %16 : vector<1x256xf32> to vector<4x256xf32>
    %18 = arith.subf %4, %17 : vector<4x256xf32>
    %19 = math.exp %18 : vector<4x256xf32>
    %cst_7 = arith.constant dense<0.000000e+00> : vector<256xf32>
    %20 = vector.multi_reduction <add>, %19, %cst_7 [0] : vector<4x256xf32> to vector<256xf32>
    %21 = vector.shape_cast %20 : vector<256xf32> to vector<1x256xf32>
    %22 = tpu.reciprocal %21 : vector<1x256xf32> -> vector<1x256xf32>
    %23 = vector.broadcast %22 : vector<1x256xf32> to vector<4x256xf32>
    %24 = arith.mulf %19, %23 : vector<4x256xf32>
    %25 = math.log %21 : vector<1x256xf32>
    %26 = arith.addf %16, %25 : vector<1x256xf32>
    %27 = tpu.iota {dimensions = array<i32: 0>} : vector<4x256xi32>
    %28 = vector.broadcast %14 : vector<1x256xi32> to vector<4x256xi32>
    %29 = arith.cmpi eq, %27, %28 : vector<4x256xi32>
    %cst_8 = arith.constant 0.000000e+00 : f32
    %30 = vector.shape_cast %10 : vector<1x256xf32> to vector<1x256xf32>
    %31 = vector.broadcast %30 : vector<1x256xf32> to vector<4x256xf32>
    %32 = vector.broadcast %cst_8 : f32 to vector<4x256xf32>
    %33 = arith.select %29, %31, %32 : vector<4x256xi1>, vector<4x256xf32>
    %34 = arith.mulf %4, %33 : vector<4x256xf32>
    %cst_9 = arith.constant dense<0.000000e+00> : vector<256xf32>
    %35 = vector.multi_reduction <add>, %34, %cst_9 [0] : vector<4x256xf32> to vector<256xf32>
    %36 = vector.shape_cast %35 : vector<256xf32> to vector<1x256xf32>
    %37 = arith.subf %26, %36 : vector<1x256xf32>
    %38 = arith.mulf %37, %10 : vector<1x256xf32>
    %c0_10 = arith.constant 0 : index
    %c0_11 = arith.constant 0 : index
    %39 = vector.load %arg9[%c0_10, %c0_11] : memref<1x1xf32, #tpu.memory_space<vmem>>, vector<1x1xf32>
    %cst_12 = arith.constant dense<0.000000e+00> : vector<1xf32>
    %40 = vector.multi_reduction <add>, %38, %cst_12 [1] : vector<1x256xf32> to vector<1xf32>
    %41 = vector.shape_cast %40 : vector<1xf32> to vector<1x1xf32>
    %42 = arith.addf %39, %41 : vector<1x1xf32>
    %c0_13 = arith.constant 0 : index
    %c0_14 = arith.constant 0 : index
    %43 = vector.load %arg9[%c0_13, %c0_14] : memref<1x1xf32, #tpu.memory_space<vmem>>, vector<1x1xf32>
    tpu.vector_store %arg9[%c0_13, %c0_14], %42 {strides = array<i32>} : memref<1x1xf32, #tpu.memory_space<vmem>>, vector<1x1xf32>,
    %c0_15 = arith.constant 0 : index
    %c0_16 = arith.constant 0 : index
    %44 = vector.load %arg10[%c0_15, %c0_16] : memref<1x1xf32, #tpu.memory_space<vmem>>, vector<1x1xf32>
    %cst_17 = arith.constant dense<0.000000e+00> : vector<1xf32>
    %45 = vector.multi_reduction <add>, %10, %cst_17 [1] : vector<1x256xf32> to vector<1xf32>
    %46 = vector.shape_cast %45 : vector<1xf32> to vector<1x1xf32>
    %47 = arith.addf %44, %46 : vector<1x1xf32>
    %c0_18 = arith.constant 0 : index
    %c0_19 = arith.constant 0 : index
    %48 = vector.load %arg10[%c0_18, %c0_19] : memref<1x1xf32, #tpu.memory_space<vmem>>, vector<1x1xf32>
    tpu.vector_store %arg10[%c0_18, %c0_19], %47 {strides = array<i32>} : memref<1x1xf32, #tpu.memory_space<vmem>>, vector<1x1xf32>,
    %c0_20 = arith.constant 0 : index
    %c0_21 = arith.constant 0 : index
    %49 = vector.load %arg6[%c0_20, %c0_21] : memref<4x1xf32, #tpu.memory_space<vmem>>, vector<4x1xf32>
    %50 = arith.mulf %24, %33 : vector<4x256xf32>
    %cst_22 = arith.constant dense<0.000000e+00> : vector<4xf32>
    %51 = vector.multi_reduction <add>, %50, %cst_22 [1] : vector<4x256xf32> to vector<4xf32>
    %52 = vector.shape_cast %51 : vector<4xf32> to vector<4x1xf32>
    %53 = arith.addf %49, %52 : vector<4x1xf32>
    %c0_23 = arith.constant 0 : index
    %c0_24 = arith.constant 0 : index
    %54 = vector.load %arg6[%c0_23, %c0_24] : memref<4x1xf32, #tpu.memory_space<vmem>>, vector<4x1xf32>
    tpu.vector_store %arg6[%c0_23, %c0_24], %53 {strides = array<i32>} : memref<4x1xf32, #tpu.memory_space<vmem>>, vector<4x1xf32>,
    %c0_25 = arith.constant 0 : index
    %c0_26 = arith.constant 0 : index
    %55 = vector.load %arg7[%c0_25, %c0_26] : memref<4x1xf32, #tpu.memory_space<vmem>>, vector<4x1xf32>
    %56 = vector.broadcast %10 : vector<1x256xf32> to vector<4x256xf32>
    %57 = arith.mulf %24, %56 : vector<4x256xf32>
    %cst_27 = arith.constant dense<0.000000e+00> : vector<4xf32>
    %58 = vector.multi_reduction <add>, %57, %cst_27 [1] : vector<4x256xf32> to vector<4xf32>
    %59 = vector.shape_cast %58 : vector<4xf32> to vector<4x1xf32>
    %60 = arith.addf %55, %59 : vector<4x1xf32>
    %c0_28 = arith.constant 0 : index
    %c0_29 = arith.constant 0 : index
    %61 = vector.load %arg7[%c0_28, %c0_29] : memref<4x1xf32, #tpu.memory_space<vmem>>, vector<4x1xf32>
    tpu.vector_store %arg7[%c0_28, %c0_29], %60 {strides = array<i32>} : memref<4x1xf32, #tpu.memory_space<vmem>>, vector<4x1xf32>,
    %c0_30 = arith.constant 0 : index
    %c0_31 = arith.constant 0 : index
    %62 = vector.load %arg8[%c0_30, %c0_31] : memref<4x1xf32, #tpu.memory_space<vmem>>, vector<4x1xf32>
    %cst_32 = arith.constant dense<0.000000e+00> : vector<4xf32>
    %63 = vector.multi_reduction <add>, %33, %cst_32 [1] : vector<4x256xf32> to vector<4xf32>
    %64 = vector.shape_cast %63 : vector<4xf32> to vector<4x1xf32>
    %65 = arith.addf %62, %64 : vector<4x1xf32>
    %c0_33 = arith.constant 0 : index
    %c0_34 = arith.constant 0 : index
    %66 = vector.load %arg8[%c0_33, %c0_34] : memref<4x1xf32, #tpu.memory_space<vmem>>, vector<4x1xf32>
    tpu.vector_store %arg8[%c0_33, %c0_34], %65 {strides = array<i32>} : memref<4x1xf32, #tpu.memory_space<vmem>>, vector<4x1xf32>,
    %c0_i32_35 = arith.constant 0 : i32
    %67 = arith.cmpi eq, %arg1, %c0_i32_35 : i32
    %68 = arith.extui %67 : i1 to i32
    %c0_i32_36 = arith.constant 0 : i32
    %69 = arith.cmpi ne, %68, %c0_i32_36 : i32
    scf.if %69 {
      %c0_37 = arith.constant 0 : index
      %c0_38 = arith.constant 0 : index
      %70 = vector.load %arg6[%c0_37, %c0_38] : memref<4x1xf32, #tpu.memory_space<vmem>>, vector<4x1xf32>
      %c0_39 = arith.constant 0 : index
      %c0_40 = arith.constant 0 : index
      %71 = vector.load %arg7[%c0_39, %c0_40] : memref<4x1xf32, #tpu.memory_space<vmem>>, vector<4x1xf32>
      %c0_41 = arith.constant 0 : index
      %c0_42 = arith.constant 0 : index
      %72 = vector.load %arg8[%c0_41, %c0_42] : memref<4x1xf32, #tpu.memory_space<vmem>>, vector<4x1xf32>
      %73 = tpu.concatenate %70, %71, %72 in 1 : vector<4x1xf32>, vector<4x1xf32>, vector<4x1xf32> -> vector<4x3xf32>
      %74 = vector.shape_cast %73 : vector<4x3xf32> to vector<1x4x3xf32>
      %c0_43 = arith.constant 0 : index
      %c0_44 = arith.constant 0 : index
      %c0_45 = arith.constant 0 : index
      %75 = vector.load %arg4[%c0_43, %c0_44, %c0_45] : memref<1x4x3xf32, #tpu.memory_space<vmem>>, vector<1x4x3xf32>
      tpu.vector_store %arg4[%c0_43, %c0_44, %c0_45], %74 {strides = array<i32>} : memref<1x4x3xf32, #tpu.memory_space<vmem>>, vector<1x4x3xf32>,
      %c0_46 = arith.constant 0 : index
      %c0_47 = arith.constant 0 : index
      %76 = vector.load %arg9[%c0_46, %c0_47] : memref<1x1xf32, #tpu.memory_space<vmem>>, vector<1x1xf32>
      %c0_48 = arith.constant 0 : index
      %c0_49 = arith.constant 0 : index
      %77 = vector.load %arg10[%c0_48, %c0_49] : memref<1x1xf32, #tpu.memory_space<vmem>>, vector<1x1xf32>
      %78 = tpu.concatenate %76, %77 in 1 : vector<1x1xf32>, vector<1x1xf32> -> vector<1x2xf32>
      %79 = vector.shape_cast %78 : vector<1x2xf32> to vector<1x1x2xf32>
      %c0_50 = arith.constant 0 : index
      %c0_51 = arith.constant 0 : index
      %c0_52 = arith.constant 0 : index
      %80 = vector.load %arg5[%c0_50, %c0_51, %c0_52] : memref<1x1x2xf32, #tpu.memory_space<vmem>>, vector<1x1x2xf32>
      tpu.vector_store %arg5[%c0_50, %c0_51, %c0_52], %79 {strides = array<i32>} : memref<1x1x2xf32, #tpu.memory_space<vmem>>, vector<1x1x2xf32>,
    } else {
    }
    return
  }
  func.func @transform_0(%arg0: i32, %arg1: i32) -> (i32, i32, i32) {
    %c0_i32 = arith.constant 0 : i32
    %c0_i32_0 = arith.constant 0 : i32
    return %arg0, %c0_i32, %arg1 : i32, i32, i32
  }
  func.func @transform_1(%arg0: i32, %arg1: i32) -> (i32, i32, i32) {
    %c0_i32 = arith.constant 0 : i32
    %c0_i32_0 = arith.constant 0 : i32
    return %arg0, %c0_i32, %arg1 : i32, i32, i32
  }
  func.func @transform_2(%arg0: i32, %arg1: i32) -> (i32, i32, i32) {
    %c0_i32 = arith.constant 0 : i32
    %c0_i32_0 = arith.constant 0 : i32
    %c0_i32_1 = arith.constant 0 : i32
    return %arg0, %c0_i32, %c0_i32_0 : i32, i32, i32
  }
  func.func @transform_3(%arg0: i32, %arg1: i32) -> (i32, i32, i32) {
    %c0_i32 = arith.constant 0 : i32
    %c0_i32_0 = arith.constant 0 : i32
    %c0_i32_1 = arith.constant 0 : i32
    return %arg0, %c0_i32, %c0_i32_0 : i32, i32, i32
  }
}

</mosaic_0001>

<llo_original>
// kernel: tpu_custom_call.1
$region0: #{tpu_custom_call.1}
  #allocation0 [shape = 'u32[]', space=smem, size = 0x4, offset = 0x4, fixed_abs, tag = 'smem constant byte address 0x4 - core index']
  #allocation1 [shape = 'u32[144,128]{1,0:T(1,128)}', space=vmem, size = 0x12000, scoped, tag = 'internal scratch']
  #allocation2 [shape = 'f32[4,1]{1,0:T(4,128)}', space=vmem, size = 0x800, scoped, tag = 'scratch operand']
  #allocation3 [shape = 'f32[4,1]{1,0:T(4,128)}', space=vmem, size = 0x800, scoped, tag = 'scratch operand']
  #allocation4 [shape = 'f32[4,1]{1,0:T(4,128)}', space=vmem, size = 0x800, scoped, tag = 'scratch operand']
  #allocation5 [shape = 'f32[1,1]{1,0:T(1,128)}', space=vmem, size = 0x200, scoped, tag = 'scratch operand']
  #allocation6 [shape = 'f32[1,1]{1,0:T(1,128)}', space=vmem, size = 0x200, scoped, tag = 'scratch operand']
  %s0 = inlined_call_operand.hbm [shape: f32[2,4,256], index: 0, kind: input, shape index: {}]
  %s1 = inlined_call_operand.hbm [shape: s32[2,1,256], index: 1, kind: input, shape index: {}]
  %s2 = inlined_call_operand.vmem [shape: f32[2,4,3], index: 2, kind: output, shape index: {0}]
  %s3 = inlined_call_operand.hbm [shape: f32[2,1,2], index: 3, kind: output, shape index: {1}]
  %4 = xla_tuple %s2, %s3
  %s5 = sld [smem:[#allocation0]]
  $region65: #{tpu_custom_call.1} parent=0
    _
  %s7 = ssub.s32 1, %s5
  %s8 = scalar_select 0, %s7, %s5
  $region1: #{tpu_custom_call.1} parent=0
    #allocation7 [shape = 'u8[8192]{0}', space=vmem, size = 0x2000, scoped, tag = 'input window, operand 0']
    #allocation8 [shape = 's32[2]{0}', space=sflag, size = 0x8, scoped, tag = 'scoped memory for tpu_custom_call.1']
    #allocation9 [shape = 's32[2]{0}', space=sflag, size = 0x8, scoped, tag = 'scoped memory for tpu_custom_call.1']
    #allocation10 [shape = 'u8[2048]{0}', space=vmem, size = 0x800, scoped, tag = 'input window, operand 1']
    #allocation11 [shape = 's32[2]{0}', space=sflag, size = 0x8, scoped, tag = 'scoped memory for tpu_custom_call.1']
    #allocation12 [shape = 'u8[1024]{0}', space=vmem, size = 0x400, scoped, tag = 'output window, operand 1']
    %9 = vsyncpa [#allocation8], 0
    %s10 = scalar_lea.sflag [#allocation8], 1
    %11 = vsyncpa %s10, 0
    %12 = vsyncpa [#allocation11], 0
    %s13 = scalar_lea.sflag [#allocation11], 1
    %14 = vsyncpa %s13, 0
    %15 = vsyncpa [#allocation9], 0
    %s16 = scalar_lea.sflag [#allocation9], 1
    %17 = vsyncpa %s16, 0
    loop: start=0, step=1, limit=4
    $region2: #{tpu_custom_call.1} parent=1 // loop_pre_header
      _
    $region3: #{tpu_custom_call.1} parent=1 // loop_header
      %s19 = sphi 0, %s23
      %p20 = scmp.ge.s32.totalorder %s19, 4
      %s26 = sphi 0, %s38
      %s27 = sphi 0, %s34
      %s28 = sphi 0, %s26
      %s29 = sphi 0, %s27
      %s30 = sphi 0, %s28
      %s31 = sphi 0, %s29
      %s43 = sphi 0, %s45
      %s46 = sphi 0, %s43
      %s47 = sphi 0, %s46
      %s63 = sphi 0, %s47
      %s71 = sphi 0, %s73
      %s74 = sphi 0, %s71
      %s75 = sphi 0, %s74
      %s91 = sphi 0, %s75
      %s97 = sphi 0, %s99
      %s100 = sphi 0, %s97
      %s101 = sphi 0, %s100
      %s117 = sphi 0, %s101
      %s123 = sphi 0, %s125
      %s126 = sphi 0, %s123
      %s127 = sphi 0, %s126
      %s143 = sphi 0, %s127
    $region4: #{tpu_custom_call.1} parent=1 // loop_header_branch
      %22 = sbr.rel (%p20) target = $region8
    $region5: #{tpu_custom_call.1} parent=1 // loop_body
      %s24 = ssub.s32 %s19, 1
      %s25 = ssub.s32 %s19, 2
      %s32 = sadd.s32 1, %s27
      %p33 = scmp.ge.s32.totalorder %s32, 1
      %s34 = scalar_select %p33, 0, %s32
      %s35 = sadd.s32 1, %s26
      %s36 = scalar_select %p33, %s35, %s26
      %p37 = scmp.ge.s32.totalorder %s36, 2
      %s38 = scalar_select %p37, 0, %s36
      %s39 = ssub.s32 %s26, %s38
      %s40 = ssub.s32 %s27, %s34
      %s41 = sor.u32 %s39, %s40
      %p42 = scmp.eq.s32.totalorder %s41, 0
      %s44 = sadd.s32 %s43, 1
      %s45 = scalar_select %p42, %s43, %s44
      %p48 = pneg %p42
      %p49 = scmp.eq.s32.totalorder %s19, 1
      %p50 = por %p48, %p49
      %p51 = scmp.ne.s32.totalorder %s43, %s46
      %p52 = scmp.eq.s32.totalorder %s19, 0
      %p53 = por %p51, %p52
      %p54 = scmp.ne.s32.totalorder %s43, %s46
      %p55 = scmp.eq.s32.totalorder %s24, 1
      %p56 = por %p54, %p55
      %p57 = scmp.ne.s32.totalorder %s46, %s47
      %p58 = scmp.eq.s32.totalorder %s24, 0
      %p59 = por %p57, %p58
      %p60 = scmp.ne.s32.totalorder %s46, %s47
      %p61 = scmp.eq.s32.totalorder %s25, 1
      %p62 = por %p60, %p61
      %p64 = scmp.ne.s32.totalorder %s47, %s63
      %p65 = scmp.eq.s32.totalorder %s25, 0
      %p66 = por %p64, %p65
      %s67 = ssub.s32 %s26, %s38
      %s68 = ssub.s32 %s27, %s34
      %s69 = sor.u32 %s67, %s68
      %p70 = scmp.eq.s32.totalorder %s69, 0
      %s72 = sadd.s32 %s71, 1
      %s73 = scalar_select %p70, %s71, %s72
      %p76 = pneg %p70
      %p77 = scmp.eq.s32.totalorder %s19, 1
      %p78 = por %p76, %p77
      %p79 = scmp.ne.s32.totalorder %s71, %s74
      %p80 = scmp.eq.s32.totalorder %s19, 0
      %p81 = por %p79, %p80
      %p82 = scmp.ne.s32.totalorder %s71, %s74
      %p83 = scmp.eq.s32.totalorder %s24, 1
      %p84 = por %p82, %p83
      %p85 = scmp.ne.s32.totalorder %s74, %s75
      %p86 = scmp.eq.s32.totalorder %s24, 0
      %p87 = por %p85, %p86
      %p88 = scmp.ne.s32.totalorder %s74, %s75
      %p89 = scmp.eq.s32.totalorder %s25, 1
      %p90 = por %p88, %p89
      %p92 = scmp.ne.s32.totalorder %s75, %s91
      %p93 = scmp.eq.s32.totalorder %s25, 0
      %p94 = por %p92, %p93
      %s95 = ssub.s32 %s26, %s38
      %p96 = scmp.eq.s32.totalorder %s95, 0
      %s98 = sadd.s32 %s97, 1
      %s99 = scalar_select %p96, %s97, %s98
      %p102 = pneg %p96
      %p103 = scmp.eq.s32.totalorder %s19, 1
      %p104 = por %p102, %p103
      %p105 = scmp.ne.s32.totalorder %s97, %s100
      %p106 = scmp.eq.s32.totalorder %s19, 0
      %p107 = por %p105, %p106
      %p108 = scmp.ne.s32.totalorder %s97, %s100
      %p109 = scmp.eq.s32.totalorder %s24, 1
      %p110 = por %p108, %p109
      %p111 = scmp.ne.s32.totalorder %s100, %s101
      %p112 = scmp.eq.s32.totalorder %s24, 0
      %p113 = por %p111, %p112
      %p114 = scmp.ne.s32.totalorder %s100, %s101
      %p115 = scmp.eq.s32.totalorder %s25, 1
      %p116 = por %p114, %p115
      %p118 = scmp.ne.s32.totalorder %s101, %s117
      %p119 = scmp.eq.s32.totalorder %s25, 0
      %p120 = por %p118, %p119
      %s121 = ssub.s32 %s26, %s38
      %p122 = scmp.eq.s32.totalorder %s121, 0
      %s124 = sadd.s32 %s123, 1
      %s125 = scalar_select %p122, %s123, %s124
      %p128 = pneg %p122
      %p129 = scmp.eq.s32.totalorder %s19, 1
      %p130 = por %p128, %p129
      %p131 = scmp.ne.s32.totalorder %s123, %s126
      %p132 = scmp.eq.s32.totalorder %s19, 0
      %p133 = por %p131, %p132
      %p134 = scmp.ne.s32.totalorder %s123, %s126
      %p135 = scmp.eq.s32.totalorder %s24, 1
      %p136 = por %p134, %p135
      %p137 = scmp.ne.s32.totalorder %s126, %s127
      %p138 = scmp.eq.s32.totalorder %s24, 0
      %p139 = por %p137, %p138
      %p140 = scmp.ne.s32.totalorder %s126, %s127
      %p141 = scmp.eq.s32.totalorder %s25, 1
      %p142 = por %p140, %p141
      %p144 = scmp.ne.s32.totalorder %s127, %s143
      %p145 = scmp.eq.s32.totalorder %s25, 0
      %p146 = por %p144, %p145
      %p147 = scmp.le.s32.totalorder 1, %s19
      %p148 = scmp.lt.s32.totalorder %s19, 3
      %p149 = pnand %p147, %p148
      %p150 = pneg %p149
      // Predicated region
      $region9: #{tpu_custom_call.1} parent=5 // pred_check
        _
      $region10: #{tpu_custom_call.1} parent=5 // pred_check_branch
        %152 = sbr.rel (%p149) target = $region12
      $region11: #{tpu_custom_call.1} parent=5 // pred_region
        %s153 = ssub.s32 %s19, 1
      $region12: #{tpu_custom_call.1} parent=5 // pred_fallthru
        _
      %p154 = scmp.lt.s32.totalorder %s19, 2
      // Predicated region
      $region13: #{tpu_custom_call.1} parent=5 // pred_check
        %p155 = pneg %p154
      $region14: #{tpu_custom_call.1} parent=5 // pred_check_branch
        %157 = sbr.rel (%p155) target = $region16
      $region15: #{tpu_custom_call.1} parent=5 // pred_region
        // Predicated region
        $region17: #{tpu_custom_call.1} parent=15 // pred_check
          %p158 = pneg %p53
        $region18: #{tpu_custom_call.1} parent=15 // pred_check_branch
          %160 = sbr.rel (%p158) target = $region20
        $region19: #{tpu_custom_call.1} parent=15 // pred_region
          %s161 = sand.u32 %s43, 1
          %s162 = scalar_lea.sflag [#allocation8], %s161
          %s163 = sand.u32 %s43, 1
          %s164 = smul.addr %s163, 8
          %s165 = scalar_lea.vmem [#allocation7], %s164
          %s166 = smul.u32 2, %s27
          %s168 = ssub.s32 128, 128
          %169 = vsyncadd %s162, %s168
          %s170 = smul.addr %s26, 2
          %s171 = sadd.s32 %s166, %s170
          %s172 = smul.addr %s171, 64
          %s173 = scalar_lea.hbm %s0, %s172
          %s175 = sshll.u32 %s165, 4
          %s176 = int_to_ptr.vmem [resolvable:$true] %s175
          %178 = dma.hbm_to_vmem [thread:$0]  %s173, 128, %s176, %s162
        $region20: #{tpu_custom_call.1} parent=15 // pred_fallthru
          _
        // Predicated region
        $region21: #{tpu_custom_call.1} parent=15 // pred_check
          %p179 = pneg %p81
        $region22: #{tpu_custom_call.1} parent=15 // pred_check_branch
          %181 = sbr.rel (%p179) target = $region24
        $region23: #{tpu_custom_call.1} parent=15 // pred_region
          %s182 = sand.u32 %s71, 1
          %s183 = scalar_lea.sflag [#allocation11], %s182
          %s184 = sand.u32 %s71, 1
          %s185 = smul.addr %s184, 2
          %s186 = scalar_lea.vmem [#allocation10], %s185
          %s187 = smul.u32 2, %s27
          %s189 = ssub.s32 32, 32
          %190 = vsyncadd %s183, %s189
          %s191 = smul.addr %s26, 2
          %s192 = sadd.s32 %s187, %s191
          %s193 = smul.addr %s192, 16
          %s194 = scalar_lea.hbm %s1, %s193
          %s196 = sshll.u32 %s186, 4
          %s197 = int_to_ptr.vmem [resolvable:$true] %s196
          %199 = dma.hbm_to_vmem [thread:$0]  %s194, 32, %s197, %s183
        $region24: #{tpu_custom_call.1} parent=15 // pred_fallthru
          _
      $region16: #{tpu_custom_call.1} parent=5 // pred_fallthru
        _
      %p200 = scmp.le.s32.totalorder 1, %s19
      %p201 = scmp.lt.s32.totalorder %s19, 3
      %p202 = pnand %p200, %p201
      %p203 = pneg %p202
      // Predicated region
      $region25: #{tpu_custom_call.1} parent=5 // pred_check
        _
      $region26: #{tpu_custom_call.1} parent=5 // pred_check_branch
        %205 = sbr.rel (%p202) target = $region28
      $region27: #{tpu_custom_call.1} parent=5 // pred_region
        %s206 = ssub.s32 %s19, 1
        %s207 = sand.u32 %s46, 1
        %s208 = scalar_lea.sflag [#allocation8], %s207
        %s209 = sand.u32 %s46, 1
        %s210 = smul.addr %s209, 8
        %s211 = scalar_lea.vmem [#allocation7], %s210
        // Predicated region
        $region29: #{tpu_custom_call.1} parent=27 // pred_check
          %p212 = pneg %p59
        $region30: #{tpu_custom_call.1} parent=27 // pred_check_branch
          %214 = sbr.rel (%p212) target = $region32
        $region31: #{tpu_custom_call.1} parent=27 // pred_region
          %215 = dma.done %s208, 128
        $region32: #{tpu_custom_call.1} parent=27 // pred_fallthru
          _
        %s216 = sand.u32 %s74, 1
        %s217 = scalar_lea.sflag [#allocation11], %s216
        %s218 = sand.u32 %s74, 1
        %s219 = smul.addr %s218, 2
        %s220 = scalar_lea.vmem [#allocation10], %s219
        // Predicated region
        $region33: #{tpu_custom_call.1} parent=27 // pred_check
          %p221 = pneg %p87
        $region34: #{tpu_custom_call.1} parent=27 // pred_check_branch
          %223 = sbr.rel (%p221) target = $region36
        $region35: #{tpu_custom_call.1} parent=27 // pred_region
          %224 = dma.done %s217, 32
        $region36: #{tpu_custom_call.1} parent=27 // pred_fallthru
          _
        %s225 = sand.u32 %s46, 1
        %s226 = scalar_lea.sflag [#allocation8], %s225
        %s227 = sand.u32 %s46, 1
        %s228 = smul.addr %s227, 8
        %s229 = scalar_lea.vmem [#allocation7], %s228
        %p230 = pneg %p59
        %p231 = pneg %p56
        %s232 = sand.u32 %s74, 1
        %s233 = scalar_lea.sflag [#allocation11], %s232
        %s234 = sand.u32 %s74, 1
        %s235 = smul.addr %s234, 2
        %s236 = scalar_lea.vmem [#allocation10], %s235
        %p237 = pneg %p87
        %p238 = pneg %p84
        %p239 = pneg %p113
        %p240 = pneg %p110
        %p241 = scmp.lt.s32.totalorder %s28, 1
        %s242 = scalar_select %p241, %s28, 1
        %s243 = smul.addr %s242, 4
        %s244 = scalar_lea.vmem %s2, %s243
        %p245 = pneg %p139
        %p246 = pneg %p136
        %s247 = sand.u32 %s126, 1
        %s248 = scalar_lea.sflag [#allocation9], %s247
        %s249 = sand.u32 %s126, 1
        %s250 = scalar_lea.vmem [#allocation12], %s249
        %s251 = smul.u32 2, %s29
        %s252 = smul.u32 2, %s29
        %p253 = scmp.lt.s32.totalorder %s28, 1
        %s254 = scalar_select %p253, %s28, 1
        %s255 = smul.addr %s254, 4
        %s256 = scalar_lea.vmem %s2, %s255
        %p257 = scmp.eq.s32.totalorder %s29, 0
        // Predicated region
        $region37: #{tpu_custom_call.1} parent=27 // pred_check
          %p258 = pneg %p257
        $region38: #{tpu_custom_call.1} parent=27 // pred_check_branch
          %260 = sbr.rel (%p258) target = $region40
        $region39: #{tpu_custom_call.1} parent=27 // pred_region
          %vm261 = vcmask 3072
          %262 = vst.msk [vmem:[#allocation2] sm:$0xf] %vm261, 0.0
          %263 = vst.msk [vmem:[#allocation3] sm:$0xf] %vm261, 0.0
          %264 = vst.msk [vmem:[#allocation4] sm:$0xf] %vm261, 0.0
          %vm265 = vcmask 0
          %266 = vst.msk [vmem:[#allocation5] sm:$0x1] %vm265, 0.0
          %267 = vst.msk [vmem:[#allocation6] sm:$0x1] %vm265, 0.0
        $region40: #{tpu_custom_call.1} parent=27 // pred_fallthru
          _
        %v268 = vld [vmem:[%s211] sm:$0xff]
        %v269 = vld [vmem:[%s220] sm:$0x3]
        %vm270 = vcmp.ne.s32.totalorder %v269, 255
        %v271 = vsel %vm270, 1, 0
        %v272 = vcvt.s32.f32 %v271
        %vm273 = vcmp.gt.s32.totalorder %v269, 0
        %v274 = vsel %vm273, %v269, 0
        %vm275 = vcmp.lt.s32.totalorder %v274, 3
        %v276 = vsel %vm275, %v274, 3
        %v278 = vcombine.high %v268, %v268
        %vm280 = vcmask 1043456
        %v281 = vsel %vm280, %v268, -inf
        %v282 = vrot.slane %v281, 4
        %v283 = vmax.f32 %v281, %v282
        %v284 = vrot.slane %v283, 2
        %v285 = vmax.f32 %v283, %v284
        %v286 = vrot.slane %v285, 1
        %v287 = vmax.f32 %v285, %v286
        %v288 = vsel %vm280, %v278, -inf
        %v289 = vrot.slane %v288, 4
        %v290 = vmax.f32 %v288, %v289
        %v291 = vrot.slane %v290, 2
        %v292 = vmax.f32 %v290, %v291
        %v293 = vrot.slane %v292, 1
        %v294 = vmax.f32 %v292, %v293
        %v297 = vcombine.low %v287, %v294
        %v299 = vsub.f32 %v268, %v297
        %v300 = vmul.f32 %v299, 1.442695
        %v301 = vpow.pop %v300
        %v303 = vcombine.high %v301, %v301
        %v305 = vsel %vm280, %v301, 0.0
        %v306 = vrot.slane %v305, 4
        %v307 = vadd.f32 %v305, %v306
        %v308 = vrot.slane %v307, 2
        %v309 = vadd.f32 %v307, %v308
        %v310 = vrot.slane %v309, 1
        %v311 = vadd.f32 %v309, %v310
        %v312 = vsel %vm280, %v303, 0.0
        %v313 = vrot.slane %v312, 4
        %v314 = vadd.f32 %v312, %v313
        %v315 = vrot.slane %v314, 2
        %v316 = vadd.f32 %v314, %v315
        %v317 = vrot.slane %v316, 1
        %v318 = vadd.f32 %v316, %v317
        %v319 = vrcp.pop %v311
        %v320 = vrcp.pop %v318
        %v323 = vcombine.low %v319, %v320
        %v325 = vmul.f32 %v301, %v323
        %v326 = vlog2.pop %v311
        %v327 = vmul.f32 %v326, 0.6931472
        %v328 = vlog2.pop %v318
        %v329 = vmul.f32 %v328, 0.6931472
        %v330 = vadd.f32 %v287, %v327
        %v331 = vadd.f32 %v294, %v329
        %v332 = vlaneseq
        %v333 = vshrl.u32 %v332, 7
        %v334 = vlaneseq
        %v335 = vshrl.u32 %v334, 7
        %v336 = vsub.s32 0, %v335
        %v337 = vrot.slane %v276, %v336
        %v338 = vlaneseq
        %v339 = vshrl.u32 %v338, 7
        %v340 = vsub.s32 1, %v339
        %v341 = vrot.slane %v276, %v340
        %vm342 = vcmp.eq.s32.totalorder %v333, %v337
        %vm343 = vcmp.eq.s32.totalorder %v333, %v341
        %v345 = vlaneseq
        %v346 = vshrl.u32 %v345, 7
        %v347 = vsub.s32 0, %v346
        %v348 = vrot.slane %v272, %v347
        %v349 = vlaneseq
        %v350 = vshrl.u32 %v349, 7
        %v351 = vsub.s32 1, %v350
        %v352 = vrot.slane %v272, %v351
        %v355 = vsel %vm342, %v348, 0.0
        %v356 = vsel %vm343, %v352, 0.0
        %v359 = vcombine.low %v355, %v356
        %v361 = vmul.f32 %v268, %v359
        %v363 = vcombine.high %v361, %v361
        %v365 = vsel %vm280, %v361, 0.0
        %v366 = vrot.slane %v365, 4
        %v367 = vadd.f32 %v365, %v366
        %v368 = vrot.slane %v367, 2
        %v369 = vadd.f32 %v367, %v368
        %v370 = vrot.slane %v369, 1
        %v371 = vadd.f32 %v369, %v370
        %v372 = vsel %vm280, %v363, 0.0
        %v373 = vrot.slane %v372, 4
        %v374 = vadd.f32 %v372, %v373
        %v375 = vrot.slane %v374, 2
        %v376 = vadd.f32 %v374, %v375
        %v377 = vrot.slane %v376, 1
        %v378 = vadd.f32 %v376, %v377
        %v379 = vsub.f32 %v330, %v371
        %v380 = vsub.f32 %v331, %v378
        %v381 = vmul.f32 %v379, %v348
        %v382 = vmul.f32 %v380, %v352
        %v383 = vld [vmem:[#allocation5] sm:$0x1]
        %vm384 = vcmask 1040384
        %v385 = vsel %vm384, %v381, 0.0
        %v386 = vsel %vm384, %v382, 0.0
        %v387 = vadd.f32 %v385, %v386
        %388 = vadd.xlane.f32.xlu0 %v387
        %v389 = vpop.xlane.xlu0 %388
        %v390 = vadd.f32 %v383, %v389
        %vm391 = vcmask 0
        %392 = vst.msk [vmem:[#allocation5] sm:$0x1] %vm391, %v390
        %v393 = vld [vmem:[#allocation6] sm:$0x1]
        %v394 = vsel %vm384, %v348, 0.0
        %v395 = vsel %vm384, %v352, 0.0
        %v396 = vadd.f32 %v394, %v395
        %397 = vadd.xlane.f32.xlu0 %v396
        %v398 = vpop.xlane.xlu0 %397
        %v399 = vadd.f32 %v393, %v398
        %400 = vst.msk [vmem:[#allocation6] sm:$0x1] %vm391, %v399
        %v401 = vld [vmem:[#allocation2] sm:$0xf]
        %v402 = vmul.f32 %v325, %v359
        %v404 = vcombine.high %v402, %v402
        %v406 = vsel %vm280, %v402, 0.0
        %v407 = vsel %vm280, %v404, 0.0
        %v408 = vadd.f32 %v406, %v407
        %409 = vadd.xlane.f32.xlu0 %v408
        %v410 = vpop.xlane.xlu0 %409
        %v411 = vadd.f32 %v401, %v410
        %vm412 = vcmask 3072
        %413 = vst.msk [vmem:[#allocation2] sm:$0xf] %vm412, %v411
        %v414 = vld [vmem:[#allocation3] sm:$0xf]
        %v415 = vcombine.low %v348, %v352
        %v417 = vmul.f32 %v325, %v415
        %v419 = vcombine.high %v417, %v417
        %v421 = vsel %vm280, %v417, 0.0
        %v422 = vsel %vm280, %v419, 0.0
        %v423 = vadd.f32 %v421, %v422
        %424 = vadd.xlane.f32.xlu0 %v423
        %v425 = vpop.xlane.xlu0 %424
        %v426 = vadd.f32 %v414, %v425
        %427 = vst.msk [vmem:[#allocation3] sm:$0xf] %vm412, %v426
        %v428 = vld [vmem:[#allocation4] sm:$0xf]
        %v429 = vsel %vm280, %v355, 0.0
        %v430 = vsel %vm280, %v356, 0.0
        %v431 = vadd.f32 %v429, %v430
        %432 = vadd.xlane.f32.xlu0 %v431
        %v433 = vpop.xlane.xlu0 %432
        %v434 = vadd.f32 %v428, %v433
        %435 = vst.msk [vmem:[#allocation4] sm:$0xf] %vm412, %v434
        // Predicated region
        $region41: #{tpu_custom_call.1} parent=27 // pred_check
          %p436 = pneg %p257
        $region42: #{tpu_custom_call.1} parent=27 // pred_check_branch
          %438 = sbr.rel (%p436) target = $region44
        $region43: #{tpu_custom_call.1} parent=27 // pred_region
          %v439 = vld [vmem:[#allocation2] sm:$0xf]
          %v440 = vld [vmem:[#allocation3] sm:$0xf]
          %v441 = vld [vmem:[#allocation4] sm:$0xf]
          %443 = vrot.lane.b32.xlu0 %v440, 1
          %v444 = vpop.permute.xlu0 %443
          %447 = vrot.lane.b32.xlu0 %v441, 2
          %v448 = vpop.permute.xlu0 %447
          %vm450 = vcmask 7168
          %v451 = vsel %vm450, %v439, %v444
          %vm452 = vcmask 15360
          %v453 = vsel %vm452, %v451, %v448
          %vm454 = vcmask 19456
          %455 = vst.msk [vmem:[%s256] sm:$0xf] %vm454, %v453
          %v456 = vld [vmem:[#allocation5] sm:$0x1]
          %v457 = vld [vmem:[#allocation6] sm:$0x1]
          %v459 = vlaneseq
          %v460 = vshrl.u32 %v459, 7
          %v461 = vsub.s32 0, %v460
          %v462 = vrot.slane %v457, %v461
          %463 = vrot.lane.b32.xlu0 %v462, 1
          %v464 = vpop.permute.xlu0 %463
          %v466 = vsel %vm450, %v456, %v464
          %vm467 = vcmask 8192
          %468 = vst.msk [vmem:[%s250] sm:$0x1] %vm467, %v466
        $region44: #{tpu_custom_call.1} parent=27 // pred_fallthru
          _
        %p469 = scmp.lt.s32.totalorder %s28, 1
        %s470 = scalar_select %p469, %s28, 1
        %s471 = smul.addr %s470, 4
        %s472 = scalar_lea.vmem %s2, %s471
        %s473 = sand.u32 %s126, 1
        %s474 = scalar_lea.sflag [#allocation9], %s473
        %s475 = sand.u32 %s126, 1
        %s476 = scalar_lea.vmem [#allocation12], %s475
        // Predicated region
        $region45: #{tpu_custom_call.1} parent=27 // pred_check
          %p477 = pneg %p110
        $region46: #{tpu_custom_call.1} parent=27 // pred_check_branch
          %479 = sbr.rel (%p477) target = $region48
        $region47: #{tpu_custom_call.1} parent=27 // pred_region
          _
        $region48: #{tpu_custom_call.1} parent=27 // pred_fallthru
          _
        // Predicated region
        $region49: #{tpu_custom_call.1} parent=27 // pred_check
          %p480 = pneg %p136
        $region50: #{tpu_custom_call.1} parent=27 // pred_check_branch
          %482 = sbr.rel (%p480) target = $region52
        $region51: #{tpu_custom_call.1} parent=27 // pred_region
          %s484 = ssub.s32 16, 16
          %485 = vsyncadd %s474, %s484
          %s486 = smul.addr %s28, 16
          %s487 = scalar_lea.hbm %s3, %s486
          %s489 = sshll.u32 %s476, 4
          %s490 = int_to_ptr.vmem [resolvable:$true] %s489
          %492 = dma.vmem_to_hbm [thread:$0]  %s490, 16, %s487, %s474
        $region52: #{tpu_custom_call.1} parent=27 // pred_fallthru
          _
      $region28: #{tpu_custom_call.1} parent=5 // pred_fallthru
        _
      %p493 = scmp.le.s32.totalorder 2, %s19
      // Predicated region
      $region53: #{tpu_custom_call.1} parent=5 // pred_check
        %p494 = pneg %p493
      $region54: #{tpu_custom_call.1} parent=5 // pred_check_branch
        %496 = sbr.rel (%p494) target = $region56
      $region55: #{tpu_custom_call.1} parent=5 // pred_region
        %s497 = ssub.s32 %s19, 2
        // Predicated region
        $region57: #{tpu_custom_call.1} parent=55 // pred_check
          %p498 = pneg %p116
        $region58: #{tpu_custom_call.1} parent=55 // pred_check_branch
          %500 = sbr.rel (%p498) target = $region60
        $region59: #{tpu_custom_call.1} parent=55 // pred_region
          %p501 = scmp.lt.s32.totalorder %s30, 1
          %s502 = scalar_select %p501, %s30, 1
          %s503 = smul.addr %s502, 4
          %s504 = scalar_lea.vmem %s2, %s503
        $region60: #{tpu_custom_call.1} parent=55 // pred_fallthru
          _
        // Predicated region
        $region61: #{tpu_custom_call.1} parent=55 // pred_check
          %p505 = pneg %p142
        $region62: #{tpu_custom_call.1} parent=55 // pred_check_branch
          %507 = sbr.rel (%p505) target = $region64
        $region63: #{tpu_custom_call.1} parent=55 // pred_region
          %s508 = sand.u32 %s127, 1
          %s509 = scalar_lea.sflag [#allocation9], %s508
          %s510 = sand.u32 %s127, 1
          %s511 = scalar_lea.vmem [#allocation12], %s510
          %512 = dma.done %s509, 16
        $region64: #{tpu_custom_call.1} parent=55 // pred_fallthru
          _
      $region56: #{tpu_custom_call.1} parent=5 // pred_fallthru
        _
    $region6: #{tpu_custom_call.1} parent=1 // loop_footer
      %s23 = sadd.s32 1, %s19
    $region7: #{tpu_custom_call.1} parent=1 // loop_footer_branch
      %18 = sbr.rel target = $region3
    $region8: #{tpu_custom_call.1} parent=1 // loop_exit
      _
    %513 = vsyncpa [#allocation8], 1
    %s514 = scalar_lea.sflag [#allocation8], 1
    %515 = vsyncpa %s514, 1
    %516 = vsyncpa [#allocation11], 1
    %s517 = scalar_lea.sflag [#allocation11], 1
    %518 = vsyncpa %s517, 1
    %519 = vsyncpa [#allocation9], 1
    %s520 = scalar_lea.sflag [#allocation9], 1
    %521 = vsyncpa %s520, 1

</llo_original>
